<compile_context>
chip_gen: v7x
topology: tpu7x:2x2x1
jax: 0.10.0
libtpu: 0.0.40
codegen_flags: <defaults>
</compile_context>

<pallas_src>
from functools import partial

import jax
import jax.numpy as jnp
from jax.experimental import pallas as pl
from jax.experimental.pallas import tpu as pltpu


def _const_spec(arr):
    """BlockSpec for a weight that is identical for every grid step.

    Constant index_map + Buffered(1): a single resident VMEM buffer (fetched once)
    instead of the default double-buffering -- halves resident weight VMEM.
    """
    nd = arr.ndim

    def idx(b, t):
        return (0,) * nd

    return pl.BlockSpec(arr.shape, idx,
                        pipeline_mode=pl.Buffered(buffer_count=1))


def _kv_proj_kernel(k_ref, v_ref, wk_ref, bk_ref, wv_ref, bv_ref, kp_ref, vp_ref):
    """Shared K/V projections: kp = k @ Wk^T + bk, vp = v @ Wv^T + bv (per batch)."""
    dt = wk_ref.dtype
    k = k_ref[0].astype(dt)                                        # (TK, D)
    v = v_ref[0].astype(dt)                                        # (TK, D)
    kp = jnp.dot(k, wk_ref[...], preferred_element_type=jnp.float32) + bk_ref[...]
    vp = jnp.dot(v, wv_ref[...], preferred_element_type=jnp.float32) + bv_ref[...]
    kp_ref[0] = kp.astype(kp_ref.dtype)
    vp_ref[0] = vp.astype(vp_ref.dtype)


def _mqa_kernel(q_ref, kp_ref, vp_ref, wq_ref, bq_ref, wo_ref, bo_ref, out_ref,
                *, num_heads, head_dim):
    H, Dh = num_heads, head_dim
    kp = kp_ref[0]                                                 # (Sk, Dh)
    vp = vp_ref[0]                                                 # (Sk, Dh)
    dt = kp.dtype                                                  # MXU operand dtype
    q = q_ref[0].astype(dt)                                        # (TQ, D)

    # Q projection for ALL heads at once: a single full-width MXU matmul
    # (contraction D, H*Dh = D output columns).  1/sqrt(Dh) is already folded
    # into wq/bq on the host, f32 accumulation.
    qp = (jnp.dot(q, wq_ref[...], preferred_element_type=jnp.float32)
          + bq_ref[...]).astype(dt)                                # (TQ, D)

    # Per-head attention.  Static unroll over the (small) head count; every
    # matmul is a plain 2-D MXU call (contraction length is Dh / Sk regardless
    # of head folding) and only ONE (TQ, Sk) f32 score tile is live at a time.
    # Padded rows of a ragged final q-tile stay row-local through the softmax
    # and matmuls; their out-of-bounds writes are dropped by Pallas.
    head_outs = []
    for h in range(H):
        q_h = qp[:, h * Dh:(h + 1) * Dh]                           # (TQ, Dh) lane slice
        s = jax.lax.dot_general(q_h, kp, (((1,), (1,)), ((), ())),
                                preferred_element_type=jnp.float32)  # (TQ, Sk) f32
        # Parity-only clamp from the reference; a no-op for finite scores once
        # the row max is subtracted below.
        s = jnp.clip(s, -1000000.0, 1000000.0)
        m = jnp.max(s, axis=-1, keepdims=True)
        p = jnp.exp(s - m)
        l = jnp.sum(p, axis=-1, keepdims=True)
        # Unnormalized attn @ V, then deferred EXACT normalization on (TQ, Dh)
        # (Sk/Dh x fewer normalization multiplies than scaling `p` itself).
        o = jnp.dot(p.astype(dt), vp, preferred_element_type=jnp.float32)
        head_outs.append((o * pl.reciprocal(l, approx=False)).astype(dt))

    concat = jnp.concatenate(head_outs, axis=-1)                   # (TQ, H*Dh) = (TQ, D)
    # Output projection: one MXU matmul with contraction length H*Dh = D
    # (no (H, TQ, D) partials, no cross-head reduction).
    out = (jnp.dot(concat, wo_ref[...], preferred_element_type=jnp.float32)
           + bo_ref[...])
    out_ref[0] = out.astype(out_ref.dtype)


def multi_query_attention(q, k, v, params, num_heads, *, use_bf16_mxu=False):
    """Pallas TPU forward pass matching MultiQueryAttention.forward (mask=None)."""
    wq, bq, wk, bk, wv, bv, wo, bo = params
    B, Sq, D = q.shape
    Sk = k.shape[1]
    H = num_heads
    assert D % H == 0
    Dh = D // H
    scale = 1.0 / (Dh ** 0.5)

    out_dtype = q.dtype
    # bf16 MXU operands (with f32 accumulation) are the main extra lever on v5e.
    cdt = jnp.bfloat16 if use_bf16_mxu else q.dtype
    f32 = jnp.float32

    # ---- host-side (free) weight prep ------------------------------------
    # Transposed (in, out) layouts so every in-kernel matmul is a plain 2-D dot;
    # the softmax scale is folded into the Q projection weights/bias.
    wq_t = (wq.T * scale).astype(cdt)                  # (D, D)
    bq_s = (bq * scale).astype(f32).reshape(1, D)
    wk_t = wk.T.astype(cdt)                            # (D, Dh)
    bk2 = bk.astype(f32).reshape(1, Dh)
    wv_t = wv.T.astype(cdt)                            # (D, Dh)
    bv2 = bv.astype(f32).reshape(1, Dh)
    wo_t = wo.T.astype(cdt)                            # (D, D)
    bo2 = bo.astype(f32).reshape(1, D)

    act_isz = q.dtype.itemsize
    w_isz = jnp.dtype(cdt).itemsize

    # ---- stage 1: shared K/V projections (hoisted out of the attention
    #      kernel: computed once per batch, not once per q-tile) -------------
    TK = Sk if Sk <= 512 else 512
    nk = pl.cdiv(Sk, TK)
    kv_est = 2 * 2 * TK * D * act_isz + 2 * 2 * TK * Dh * w_isz \
        + 2 * (D * Dh) * w_isz + 2 * Dh * 4 + (1 << 20)
    kv_vmem = int(min(max(kv_est, 32 * 1024 * 1024), 48 * 1024 * 1024))
    kv_cost = pl.CostEstimate(
        flops=int(2 * 2 * B * Sk * D * Dh),
        transcendentals=0,
        bytes_accessed=int((k.size + v.size) * act_isz
                           + (wk_t.size + wv_t.size) * w_isz
                           + 2 * B * Sk * Dh * w_isz))
    kp, vp = pl.pallas_call(
        _kv_proj_kernel,
        out_shape=(jax.ShapeDtypeStruct((B, Sk, Dh), cdt),
                   jax.ShapeDtypeStruct((B, Sk, Dh), cdt)),
        grid=(B, nk),
        in_specs=[
            pl.BlockSpec((1, TK, D), lambda b, s: (b, s, 0)),      # k tile
            pl.BlockSpec((1, TK, D), lambda b, s: (b, s, 0)),      # v tile
            _const_spec(wk_t), _const_spec(bk2),
            _const_spec(wv_t), _const_spec(bv2),
        ],
        out_specs=(pl.BlockSpec((1, TK, Dh), lambda b, s: (b, s, 0)),
                   pl.BlockSpec((1, TK, Dh), lambda b, s: (b, s, 0))),
        compiler_params=pltpu.CompilerParams(
            dimension_semantics=("parallel", "parallel"),
            vmem_limit_bytes=kv_vmem),
        cost_estimate=kv_cost,
    )(k, v, wk_t, bk2, wv_t, bv2)

    # ---- stage 2: attention ------------------------------------------------
    # q-tile: largest of <=256 rows that keeps the estimated footprint under
    # ~40 MiB (v7x has 64 MiB physical VMEM per core); also guarantee >= 2 grid
    # steps so both v7x TensorCores get work even at B == 1.
    TQ = Sq if Sq <= 256 else 256
    if B == 1 and Sq > 8 and pl.cdiv(Sq, TQ) < 2:
        TQ = max(8, ((Sq + 1) // 2 + 7) // 8 * 8)

    def footprint(t):
        blocks = 2 * t * D * act_isz * 2               # q + out blocks (double-buffered)
        blocks += 2 * 2 * Sk * Dh * w_isz              # kp/vp blocks (double-buffered)
        weights = (wq_t.size + wo_t.size) * w_isz + (bq_s.size + bo2.size) * 4
        live = 2 * t * Sk * 4 + 3 * t * D * 4          # one head's scores/p + qp/out acc
        return blocks + weights + live

    while TQ > 128 and footprint(TQ) > 40 * 1024 * 1024:
        TQ = max(128, TQ // 2)
    nq = pl.cdiv(Sq, TQ)
    vmem_limit = int(min(max(footprint(TQ) + (2 << 20), 32 * 1024 * 1024),
                         48 * 1024 * 1024))

    mqa_cost = pl.CostEstimate(
        flops=int(2 * 2 * B * Sq * D * D + 2 * 2 * B * H * Sq * Sk * Dh),
        transcendentals=int(B * H * Sq * Sk),
        bytes_accessed=int(q.size * act_isz + 2 * B * Sk * Dh * w_isz
                           + (wq_t.size + wo_t.size) * w_isz
                           + (bq_s.size + bo2.size) * 4
                           + B * Sq * D * act_isz))

    # NOTE: kp/vp blocks only change with the batch index; on v7x their specs
    # could also use pl.Buffered(1) to shave another 2*Sk*Dh block of VMEM.
    return pl.pallas_call(
        partial(_mqa_kernel, num_heads=H, head_dim=Dh),
        out_shape=jax.ShapeDtypeStruct((B, Sq, D), out_dtype),
        grid=(B, nq),
        in_specs=[
            pl.BlockSpec((1, TQ, D), lambda b, t: (b, t, 0)),      # q tile
            pl.BlockSpec((1, Sk, Dh), lambda b, t: (b, 0, 0)),     # kp (full Sk)
            pl.BlockSpec((1, Sk, Dh), lambda b, t: (b, 0, 0)),     # vp (full Sk)
            _const_spec(wq_t), _const_spec(bq_s),
            _const_spec(wo_t), _const_spec(bo2),
        ],
        out_specs=pl.BlockSpec((1, TQ, D), lambda b, t: (b, t, 0)),
        compiler_params=pltpu.CompilerParams(
            dimension_semantics=("parallel", "parallel"),
            vmem_limit_bytes=vmem_limit),
        cost_estimate=mqa_cost,
    )(q, kp, vp, wq_t, bq_s, wo_t, bo2)


def _init_linear(key, out_features, in_features):
    # nn.Linear default init: U(-1/sqrt(in), 1/sqrt(in)) for weight and bias.
    kw, kb = jax.random.split(key)
    bound = 1.0 / jnp.sqrt(jnp.float32(in_features))
    w = jax.random.uniform(kw, (out_features, in_features), jnp.float32,
                           -bound, bound)
    b = jax.random.uniform(kb, (out_features,), jnp.float32, -bound, bound)
    return w, b


def _reference_mqa(q, k, v, params, num_heads):
    wq, bq, wk, bk, wv, bv, wo, bo = params
    B, Sq, D = q.shape
    Dh = D // num_heads
    qp = q @ wq.T + bq
    kp = k @ wk.T + bk
    vp = v @ wv.T + bv
    qh = qp.reshape(B, Sq, num_heads, Dh).transpose(0, 2, 1, 3)
    scores = jnp.einsum('bhqd,bkd->bhqk', qh, kp) / jnp.sqrt(jnp.float32(Dh))
    scores = jnp.clip(scores, -1000000.0, 1000000.0)
    attn = jax.nn.softmax(scores, axis=-1)
    oh = jnp.einsum('bhqk,bkd->bhqd', attn, vp)
    concat = oh.transpose(0, 2, 1, 3).reshape(B, Sq, D)
    return concat @ wo.T + bo


if __name__ == "__main__":
    model_dimension = 32
    num_heads = 4
    head_dim = model_dimension // num_heads
    batch = 2
    seq = 8

    key = jax.random.PRNGKey(0)
    kq, kk, kv, kwq, kwk, kwv, kwo = jax.random.split(key, 7)

    q = jax.random.normal(kq, (batch, seq, model_dimension), jnp.float32)
    k = jax.random.normal(kk, (batch, seq, model_dimension), jnp.float32)
    v = jax.random.normal(kv, (batch, seq, model_dimension), jnp.float32)

    wq, bq = _init_linear(kwq, model_dimension, model_dimension)
    wk, bk = _init_linear(kwk, head_dim, model_dimension)
    wv, bv = _init_linear(kwv, head_dim, model_dimension)
    wo, bo = _init_linear(kwo, model_dimension, model_dimension)
    params = (wq, bq, wk, bk, wv, bv, wo, bo)

    out = multi_query_attention(q, k, v, params, num_heads)
    out = jax.block_until_ready(out)

    ref = jax.block_until_ready(_reference_mqa(q, k, v, params, num_heads))
    assert out.shape == (batch, seq, model_dimension)
    # Tolerance tightened from 2e-3 -> 1e-3: the approximate EUP reciprocal is
    # gone (normalization is deferred and uses an exact reciprocal); the
    # remaining budget covers MXU-vs-XLA f32 matmul precision differences.
    err = jnp.max(jnp.abs(out - ref))
    assert jnp.allclose(out, ref, atol=1e-3, rtol=1e-3), f"max abs err {err}"

    print("KERNEL_OK")
</pallas_src>

<mosaic_0001>
module attributes {stable_mosaic.version = 11 : i64} {
  func.func @_kv_proj_kernel(%arg0: i32, %arg1: i32, %arg2: memref<1x8x32xf32, #tpu.memory_space<vmem>>, %arg3: memref<1x8x32xf32, #tpu.memory_space<vmem>>, %arg4: memref<32x8xf32, #tpu.memory_space<vmem>>, %arg5: memref<1x8xf32, #tpu.memory_space<vmem>>, %arg6: memref<32x8xf32, #tpu.memory_space<vmem>>, %arg7: memref<1x8xf32, #tpu.memory_space<vmem>>, %arg8: memref<1x8x8xf32, #tpu.memory_space<vmem>>, %arg9: memref<1x8x8xf32, #tpu.memory_space<vmem>>) attributes {dimension_semantics = [#tpu.dimension_semantics<parallel>, #tpu.dimension_semantics<parallel>], iteration_bounds = array<i64: 2, 1>, scalar_prefetch = 0 : i64, scratch_operands = 0 : i64, tpu.core_type = #tpu.core_type<tc>, window_params = [{transform_indices = @transform_0, window_bounds = array<i64: 1, 8, 32>}, {transform_indices = @transform_1, window_bounds = array<i64: 1, 8, 32>}, {pipeline_mode = #tpu.pipeline_mode<synchronous>, transform_indices = @transform_2, window_bounds = array<i64: 32, 8>}, {pipeline_mode = #tpu.pipeline_mode<synchronous>, transform_indices = @transform_3, window_bounds = array<i64: 1, 8>}, {pipeline_mode = #tpu.pipeline_mode<synchronous>, transform_indices = @transform_4, window_bounds = array<i64: 32, 8>}, {pipeline_mode = #tpu.pipeline_mode<synchronous>, transform_indices = @transform_5, window_bounds = array<i64: 1, 8>}, {transform_indices = @transform_6, window_bounds = array<i64: 1, 8, 8>}, {transform_indices = @transform_7, window_bounds = array<i64: 1, 8, 8>}]} {
    %c0 = arith.constant 0 : index
    %c0_0 = arith.constant 0 : index
    %c0_1 = arith.constant 0 : index
    %0 = vector.load %arg2[%c0, %c0_0, %c0_1] : memref<1x8x32xf32, #tpu.memory_space<vmem>>, vector<1x8x32xf32>
    %1 = vector.shape_cast %0 : vector<1x8x32xf32> to vector<8x32xf32>
    %c0_2 = arith.constant 0 : index
    %c0_3 = arith.constant 0 : index
    %c0_4 = arith.constant 0 : index
    %2 = vector.load %arg3[%c0_2, %c0_3, %c0_4] : memref<1x8x32xf32, #tpu.memory_space<vmem>>, vector<1x8x32xf32>
    %3 = vector.shape_cast %2 : vector<1x8x32xf32> to vector<8x32xf32>
    %c0_5 = arith.constant 0 : index
    %c0_6 = arith.constant 0 : index
    %4 = vector.load %arg4[%c0_5, %c0_6] : memref<32x8xf32, #tpu.memory_space<vmem>>, vector<32x8xf32>
    %cst = arith.constant dense<0.000000e+00> : vector<8x8xf32>
    %5 = tpu.matmul %1, %4, %cst {dimension_numbers = #tpu.dot_dimension_numbers<[1], [0], [0], [1], [0, 0, 1, 1], [], []>} : vector<8x32xf32>, vector<32x8xf32>, vector<8x8xf32> -> vector<8x8xf32>
    %c0_7 = arith.constant 0 : index
    %c0_8 = arith.constant 0 : index
    %6 = vector.load %arg5[%c0_7, %c0_8] : memref<1x8xf32, #tpu.memory_space<vmem>>, vector<1x8xf32>
    %7 = vector.broadcast %6 : vector<1x8xf32> to vector<8x8xf32>
    %8 = arith.addf %5, %7 : vector<8x8xf32>
    %c0_9 = arith.constant 0 : index
    %c0_10 = arith.constant 0 : index
    %9 = vector.load %arg6[%c0_9, %c0_10] : memref<32x8xf32, #tpu.memory_space<vmem>>, vector<32x8xf32>
    %cst_11 = arith.constant dense<0.000000e+00> : vector<8x8xf32>
    %10 = tpu.matmul %3, %9, %cst_11 {dimension_numbers = #tpu.dot_dimension_numbers<[1], [0], [0], [1], [0, 0, 1, 1], [], []>} : vector<8x32xf32>, vector<32x8xf32>, vector<8x8xf32> -> vector<8x8xf32>
    %c0_12 = arith.constant 0 : index
    %c0_13 = arith.constant 0 : index
    %11 = vector.load %arg7[%c0_12, %c0_13] : memref<1x8xf32, #tpu.memory_space<vmem>>, vector<1x8xf32>
    %12 = vector.broadcast %11 : vector<1x8xf32> to vector<8x8xf32>
    %13 = arith.addf %10, %12 : vector<8x8xf32>
    %c0_14 = arith.constant 0 : index
    %c0_15 = arith.constant 0 : index
    %c0_16 = arith.constant 0 : index
    %14 = vector.load %arg8[%c0_14, %c0_15, %c0_16] : memref<1x8x8xf32, #tpu.memory_space<vmem>>, vector<1x8x8xf32>
    %15 = vector.shape_cast %14 : vector<1x8x8xf32> to vector<8x8xf32>
    %16 = vector.shape_cast %8 : vector<8x8xf32> to vector<1x8x8xf32>
    tpu.vector_store %arg8[%c0_14, %c0_15, %c0_16], %16 {strides = array<i32>} : memref<1x8x8xf32, #tpu.memory_space<vmem>>, vector<1x8x8xf32>,
    %c0_17 = arith.constant 0 : index
    %c0_18 = arith.constant 0 : index
    %c0_19 = arith.constant 0 : index
    %17 = vector.load %arg9[%c0_17, %c0_18, %c0_19] : memref<1x8x8xf32, #tpu.memory_space<vmem>>, vector<1x8x8xf32>
    %18 = vector.shape_cast %17 : vector<1x8x8xf32> to vector<8x8xf32>
    %19 = vector.shape_cast %13 : vector<8x8xf32> to vector<1x8x8xf32>
    tpu.vector_store %arg9[%c0_17, %c0_18, %c0_19], %19 {strides = array<i32>} : memref<1x8x8xf32, #tpu.memory_space<vmem>>, vector<1x8x8xf32>,
    return
  }
  func.func @transform_0(%arg0: i32, %arg1: i32) -> (i32, i32, i32) {
    %c0_i32 = arith.constant 0 : i32
    %c0_i32_0 = arith.constant 0 : i32
    return %arg0, %arg1, %c0_i32 : i32, i32, i32
  }
  func.func @transform_1(%arg0: i32, %arg1: i32) -> (i32, i32, i32) {
    %c0_i32 = arith.constant 0 : i32
    %c0_i32_0 = arith.constant 0 : i32
    return %arg0, %arg1, %c0_i32 : i32, i32, i32
  }
  func.func @transform_2(%arg0: i32, %arg1: i32) -> (i32, i32) {
    %c0_i32 = arith.constant 0 : i32
    %c0_i32_0 = arith.constant 0 : i32
    %c0_i32_1 = arith.constant 0 : i32
    return %c0_i32, %c0_i32_0 : i32, i32
  }
  func.func @transform_3(%arg0: i32, %arg1: i32) -> (i32, i32) {
    %c0_i32 = arith.constant 0 : i32
    %c0_i32_0 = arith.constant 0 : i32
    %c0_i32_1 = arith.constant 0 : i32
    return %c0_i32, %c0_i32_0 : i32, i32
  }
  func.func @transform_4(%arg0: i32, %arg1: i32) -> (i32, i32) {
    %c0_i32 = arith.constant 0 : i32
    %c0_i32_0 = arith.constant 0 : i32
    %c0_i32_1 = arith.constant 0 : i32
    return %c0_i32, %c0_i32_0 : i32, i32
  }
  func.func @transform_5(%arg0: i32, %arg1: i32) -> (i32, i32) {
    %c0_i32 = arith.constant 0 : i32
    %c0_i32_0 = arith.constant 0 : i32
    %c0_i32_1 = arith.constant 0 : i32
    return %c0_i32, %c0_i32_0 : i32, i32
  }
  func.func @transform_6(%arg0: i32, %arg1: i32) -> (i32, i32, i32) {
    %c0_i32 = arith.constant 0 : i32
    %c0_i32_0 = arith.constant 0 : i32
    return %arg0, %arg1, %c0_i32 : i32, i32, i32
  }
  func.func @transform_7(%arg0: i32, %arg1: i32) -> (i32, i32, i32) {
    %c0_i32 = arith.constant 0 : i32
    %c0_i32_0 = arith.constant 0 : i32
    return %arg0, %arg1, %c0_i32 : i32, i32, i32
  }
}

</mosaic_0001>

<llo_original>
// kernel: tpu_custom_call.1
$region0: #{tpu_custom_call.1}
  #allocation0 [shape = 'u32[]', space=smem, size = 0x4, offset = 0x4, fixed_abs, tag = 'smem constant byte address 0x4 - core index']
  #allocation1 [shape = 'u32[144,128]{1,0:T(1,128)}', space=vmem, size = 0x12000, scoped, tag = 'internal scratch']
  %s0 = inlined_call_operand.vmem [shape: f32[2,8,32], index: 0, kind: input, shape index: {}]
  %s1 = inlined_call_operand.vmem [shape: f32[2,8,32], index: 1, kind: input, shape index: {}]
  %s2 = inlined_call_operand.vmem [shape: f32[32,8], index: 2, kind: input, shape index: {}]
  %s3 = inlined_call_operand.vmem [shape: f32[1,8], index: 3, kind: input, shape index: {}]
  %s4 = inlined_call_operand.vmem [shape: f32[32,8], index: 4, kind: input, shape index: {}]
  %s5 = inlined_call_operand.vmem [shape: f32[1,8], index: 5, kind: input, shape index: {}]
  %s6 = inlined_call_operand.hbm [shape: f32[2,8,8], index: 6, kind: output, shape index: {0}]
  %s7 = inlined_call_operand.hbm [shape: f32[2,8,8], index: 7, kind: output, shape index: {1}]
  %8 = xla_tuple %s6, %s7
  %s9 = sld [smem:[#allocation0]]
  $region65: #{tpu_custom_call.1} parent=0
    _
  %s11 = ssub.s32 1, %s9
  %s12 = scalar_select 0, %s11, %s9
  $region1: #{tpu_custom_call.1} parent=0
    #allocation2 [shape = 'u8[8192]{0}', space=vmem, size = 0x2000, scoped, tag = 'output window, operand 0']
    #allocation3 [shape = 's32[2]{0}', space=sflag, size = 0x8, scoped, tag = 'scoped memory for tpu_custom_call.1']
    #allocation4 [shape = 'u8[8192]{0}', space=vmem, size = 0x2000, scoped, tag = 'output window, operand 1']
    #allocation5 [shape = 's32[2]{0}', space=sflag, size = 0x8, scoped, tag = 'scoped memory for tpu_custom_call.1']
    %13 = vsyncpa [#allocation3], 0
    %s14 = scalar_lea.sflag [#allocation3], 1
    %15 = vsyncpa %s14, 0
    %16 = vsyncpa [#allocation5], 0
    %s17 = scalar_lea.sflag [#allocation5], 1
    %18 = vsyncpa %s17, 0
    loop: start=0, step=1, limit=4
    $region2: #{tpu_custom_call.1} parent=1 // loop_pre_header
      _
    $region3: #{tpu_custom_call.1} parent=1 // loop_header
      %s20 = sphi 0, %s24
      %p21 = scmp.ge.s32.totalorder %s20, 4
      %s27 = sphi 0, %s39
      %s28 = sphi 0, %s35
      %s29 = sphi 0, %s27
      %s30 = sphi 0, %s28
      %s31 = sphi 0, %s29
      %s32 = sphi 0, %s30
      %s44 = sphi 0, %s46
      %s47 = sphi 0, %s44
      %s48 = sphi 0, %s47
      %s64 = sphi 0, %s48
      %s72 = sphi 0, %s74
      %s75 = sphi 0, %s72
      %s76 = sphi 0, %s75
      %s92 = sphi 0, %s76
      %s96 = sphi 0, %s96
      %s98 = sphi 0, %s96
      %s99 = sphi 0, %s98
      %s113 = sphi 0, %s99
      %s117 = sphi 0, %s117
      %s119 = sphi 0, %s117
      %s120 = sphi 0, %s119
      %s134 = sphi 0, %s120
      %s138 = sphi 0, %s138
      %s140 = sphi 0, %s138
      %s141 = sphi 0, %s140
      %s155 = sphi 0, %s141
      %s159 = sphi 0, %s159
      %s161 = sphi 0, %s159
      %s162 = sphi 0, %s161
      %s176 = sphi 0, %s162
      %s184 = sphi 0, %s186
      %s187 = sphi 0, %s184
      %s188 = sphi 0, %s187
      %s204 = sphi 0, %s188
      %s212 = sphi 0, %s214
      %s215 = sphi 0, %s212
      %s216 = sphi 0, %s215
      %s232 = sphi 0, %s216
    $region4: #{tpu_custom_call.1} parent=1 // loop_header_branch
      %23 = sbr.rel (%p21) target = $region8
    $region5: #{tpu_custom_call.1} parent=1 // loop_body
      %s25 = ssub.s32 %s20, 1
      %s26 = ssub.s32 %s20, 2
      %s33 = sadd.s32 1, %s28
      %p34 = scmp.ge.s32.totalorder %s33, 1
      %s35 = scalar_select %p34, 0, %s33
      %s36 = sadd.s32 1, %s27
      %s37 = scalar_select %p34, %s36, %s27
      %p38 = scmp.ge.s32.totalorder %s37, 2
      %s39 = scalar_select %p38, 0, %s37
      %s40 = ssub.s32 %s27, %s39
      %s41 = ssub.s32 %s28, %s35
      %s42 = sor.u32 %s40, %s41
      %p43 = scmp.eq.s32.totalorder %s42, 0
      %s45 = sadd.s32 %s44, 1
      %s46 = scalar_select %p43, %s44, %s45
      %p49 = pneg %p43
      %p50 = scmp.eq.s32.totalorder %s20, 1
      %p51 = por %p49, %p50
      %p52 = scmp.ne.s32.totalorder %s44, %s47
      %p53 = scmp.eq.s32.totalorder %s20, 0
      %p54 = por %p52, %p53
      %p55 = scmp.ne.s32.totalorder %s44, %s47
      %p56 = scmp.eq.s32.totalorder %s25, 1
      %p57 = por %p55, %p56
      %p58 = scmp.ne.s32.totalorder %s47, %s48
      %p59 = scmp.eq.s32.totalorder %s25, 0
      %p60 = por %p58, %p59
      %p61 = scmp.ne.s32.totalorder %s47, %s48
      %p62 = scmp.eq.s32.totalorder %s26, 1
      %p63 = por %p61, %p62
      %p65 = scmp.ne.s32.totalorder %s48, %s64
      %p66 = scmp.eq.s32.totalorder %s26, 0
      %p67 = por %p65, %p66
      %s68 = ssub.s32 %s27, %s39
      %s69 = ssub.s32 %s28, %s35
      %s70 = sor.u32 %s68, %s69
      %p71 = scmp.eq.s32.totalorder %s70, 0
      %s73 = sadd.s32 %s72, 1
      %s74 = scalar_select %p71, %s72, %s73
      %p77 = pneg %p71
      %p78 = scmp.eq.s32.totalorder %s20, 1
      %p79 = por %p77, %p78
      %p80 = scmp.ne.s32.totalorder %s72, %s75
      %p81 = scmp.eq.s32.totalorder %s20, 0
      %p82 = por %p80, %p81
      %p83 = scmp.ne.s32.totalorder %s72, %s75
      %p84 = scmp.eq.s32.totalorder %s25, 1
      %p85 = por %p83, %p84
      %p86 = scmp.ne.s32.totalorder %s75, %s76
      %p87 = scmp.eq.s32.totalorder %s25, 0
      %p88 = por %p86, %p87
      %p89 = scmp.ne.s32.totalorder %s75, %s76
      %p90 = scmp.eq.s32.totalorder %s26, 1
      %p91 = por %p89, %p90
      %p93 = scmp.ne.s32.totalorder %s76, %s92
      %p94 = scmp.eq.s32.totalorder %s26, 0
      %p95 = por %p93, %p94
      %s97 = sadd.s32 %s96, 1
      %p100 = scmp.eq.s32.totalorder %s20, 1
      %p101 = scmp.ne.s32.totalorder %s96, %s98
      %p102 = scmp.eq.s32.totalorder %s20, 0
      %p103 = por %p101, %p102
      %p104 = scmp.ne.s32.totalorder %s96, %s98
      %p105 = scmp.eq.s32.totalorder %s25, 1
      %p106 = por %p104, %p105
      %p107 = scmp.ne.s32.totalorder %s98, %s99
      %p108 = scmp.eq.s32.totalorder %s25, 0
      %p109 = por %p107, %p108
      %p110 = scmp.ne.s32.totalorder %s98, %s99
      %p111 = scmp.eq.s32.totalorder %s26, 1
      %p112 = por %p110, %p111
      %p114 = scmp.ne.s32.totalorder %s99, %s113
      %p115 = scmp.eq.s32.totalorder %s26, 0
      %p116 = por %p114, %p115
      %s118 = sadd.s32 %s117, 1
      %p121 = scmp.eq.s32.totalorder %s20, 1
      %p122 = scmp.ne.s32.totalorder %s117, %s119
      %p123 = scmp.eq.s32.totalorder %s20, 0
      %p124 = por %p122, %p123
      %p125 = scmp.ne.s32.totalorder %s117, %s119
      %p126 = scmp.eq.s32.totalorder %s25, 1
      %p127 = por %p125, %p126
      %p128 = scmp.ne.s32.totalorder %s119, %s120
      %p129 = scmp.eq.s32.totalorder %s25, 0
      %p130 = por %p128, %p129
      %p131 = scmp.ne.s32.totalorder %s119, %s120
      %p132 = scmp.eq.s32.totalorder %s26, 1
      %p133 = por %p131, %p132
      %p135 = scmp.ne.s32.totalorder %s120, %s134
      %p136 = scmp.eq.s32.totalorder %s26, 0
      %p137 = por %p135, %p136
      %s139 = sadd.s32 %s138, 1
      %p142 = scmp.eq.s32.totalorder %s20, 1
      %p143 = scmp.ne.s32.totalorder %s138, %s140
      %p144 = scmp.eq.s32.totalorder %s20, 0
      %p145 = por %p143, %p144
      %p146 = scmp.ne.s32.totalorder %s138, %s140
      %p147 = scmp.eq.s32.totalorder %s25, 1
      %p148 = por %p146, %p147
      %p149 = scmp.ne.s32.totalorder %s140, %s141
      %p150 = scmp.eq.s32.totalorder %s25, 0
      %p151 = por %p149, %p150
      %p152 = scmp.ne.s32.totalorder %s140, %s141
      %p153 = scmp.eq.s32.totalorder %s26, 1
      %p154 = por %p152, %p153
      %p156 = scmp.ne.s32.totalorder %s141, %s155
      %p157 = scmp.eq.s32.totalorder %s26, 0
      %p158 = por %p156, %p157
      %s160 = sadd.s32 %s159, 1
      %p163 = scmp.eq.s32.totalorder %s20, 1
      %p164 = scmp.ne.s32.totalorder %s159, %s161
      %p165 = scmp.eq.s32.totalorder %s20, 0
      %p166 = por %p164, %p165
      %p167 = scmp.ne.s32.totalorder %s159, %s161
      %p168 = scmp.eq.s32.totalorder %s25, 1
      %p169 = por %p167, %p168
      %p170 = scmp.ne.s32.totalorder %s161, %s162
      %p171 = scmp.eq.s32.totalorder %s25, 0
      %p172 = por %p170, %p171
      %p173 = scmp.ne.s32.totalorder %s161, %s162
      %p174 = scmp.eq.s32.totalorder %s26, 1
      %p175 = por %p173, %p174
      %p177 = scmp.ne.s32.totalorder %s162, %s176
      %p178 = scmp.eq.s32.totalorder %s26, 0
      %p179 = por %p177, %p178
      %s180 = ssub.s32 %s27, %s39
      %s181 = ssub.s32 %s28, %s35
      %s182 = sor.u32 %s180, %s181
      %p183 = scmp.eq.s32.totalorder %s182, 0
      %s185 = sadd.s32 %s184, 1
      %s186 = scalar_select %p183, %s184, %s185
      %p189 = pneg %p183
      %p190 = scmp.eq.s32.totalorder %s20, 1
      %p191 = por %p189, %p190
      %p192 = scmp.ne.s32.totalorder %s184, %s187
      %p193 = scmp.eq.s32.totalorder %s20, 0
      %p194 = por %p192, %p193
      %p195 = scmp.ne.s32.totalorder %s184, %s187
      %p196 = scmp.eq.s32.totalorder %s25, 1
      %p197 = por %p195, %p196
      %p198 = scmp.ne.s32.totalorder %s187, %s188
      %p199 = scmp.eq.s32.totalorder %s25, 0
      %p200 = por %p198, %p199
      %p201 = scmp.ne.s32.totalorder %s187, %s188
      %p202 = scmp.eq.s32.totalorder %s26, 1
      %p203 = por %p201, %p202
      %p205 = scmp.ne.s32.totalorder %s188, %s204
      %p206 = scmp.eq.s32.totalorder %s26, 0
      %p207 = por %p205, %p206
      %s208 = ssub.s32 %s27, %s39
      %s209 = ssub.s32 %s28, %s35
      %s210 = sor.u32 %s208, %s209
      %p211 = scmp.eq.s32.totalorder %s210, 0
      %s213 = sadd.s32 %s212, 1
      %s214 = scalar_select %p211, %s212, %s213
      %p217 = pneg %p211
      %p218 = scmp.eq.s32.totalorder %s20, 1
      %p219 = por %p217, %p218
      %p220 = scmp.ne.s32.totalorder %s212, %s215
      %p221 = scmp.eq.s32.totalorder %s20, 0
      %p222 = por %p220, %p221
      %p223 = scmp.ne.s32.totalorder %s212, %s215
      %p224 = scmp.eq.s32.totalorder %s25, 1
      %p225 = por %p223, %p224
      %p226 = scmp.ne.s32.totalorder %s215, %s216
      %p227 = scmp.eq.s32.totalorder %s25, 0
      %p228 = por %p226, %p227
      %p229 = scmp.ne.s32.totalorder %s215, %s216
      %p230 = scmp.eq.s32.totalorder %s26, 1
      %p231 = por %p229, %p230
      %p233 = scmp.ne.s32.totalorder %s216, %s232
      %p234 = scmp.eq.s32.totalorder %s26, 0
      %p235 = por %p233, %p234
      %p236 = scmp.le.s32.totalorder 1, %s20
      %p237 = scmp.lt.s32.totalorder %s20, 3
      %p238 = pnand %p236, %p237
      %p239 = pneg %p238
      // Predicated region
      $region9: #{tpu_custom_call.1} parent=5 // pred_check
        _
      $region10: #{tpu_custom_call.1} parent=5 // pred_check_branch
        %241 = sbr.rel (%p238) target = $region12
      $region11: #{tpu_custom_call.1} parent=5 // pred_region
        %s242 = ssub.s32 %s20, 1
        // Predicated region
        $region13: #{tpu_custom_call.1} parent=11 // pred_check
          %p243 = pneg %p109
        $region14: #{tpu_custom_call.1} parent=11 // pred_check_branch
          %245 = sbr.rel (%p243) target = $region16
        $region15: #{tpu_custom_call.1} parent=11 // pred_region
          _
        $region16: #{tpu_custom_call.1} parent=11 // pred_fallthru
          _
        // Predicated region
        $region17: #{tpu_custom_call.1} parent=11 // pred_check
          %p246 = pneg %p130
        $region18: #{tpu_custom_call.1} parent=11 // pred_check_branch
          %248 = sbr.rel (%p246) target = $region20
        $region19: #{tpu_custom_call.1} parent=11 // pred_region
          _
        $region20: #{tpu_custom_call.1} parent=11 // pred_fallthru
          _
        // Predicated region
        $region21: #{tpu_custom_call.1} parent=11 // pred_check
          %p249 = pneg %p151
        $region22: #{tpu_custom_call.1} parent=11 // pred_check_branch
          %251 = sbr.rel (%p249) target = $region24
        $region23: #{tpu_custom_call.1} parent=11 // pred_region
          _
        $region24: #{tpu_custom_call.1} parent=11 // pred_fallthru
          _
        // Predicated region
        $region25: #{tpu_custom_call.1} parent=11 // pred_check
          %p252 = pneg %p172
        $region26: #{tpu_custom_call.1} parent=11 // pred_check_branch
          %254 = sbr.rel (%p252) target = $region28
        $region27: #{tpu_custom_call.1} parent=11 // pred_region
          _
        $region28: #{tpu_custom_call.1} parent=11 // pred_fallthru
          _
      $region12: #{tpu_custom_call.1} parent=5 // pred_fallthru
        _
      %p255 = scmp.lt.s32.totalorder %s20, 2
      // Predicated region
      $region29: #{tpu_custom_call.1} parent=5 // pred_check
        %p256 = pneg %p255
      $region30: #{tpu_custom_call.1} parent=5 // pred_check_branch
        %258 = sbr.rel (%p256) target = $region32
      $region31: #{tpu_custom_call.1} parent=5 // pred_region
        // Predicated region
        $region33: #{tpu_custom_call.1} parent=31 // pred_check
          %p259 = pneg %p54
        $region34: #{tpu_custom_call.1} parent=31 // pred_check_branch
          %261 = sbr.rel (%p259) target = $region36
        $region35: #{tpu_custom_call.1} parent=31 // pred_region
          %p262 = scmp.lt.s32.totalorder %s27, 1
          %s263 = scalar_select %p262, %s27, 1
          %p264 = scmp.lt.s32.totalorder %s28, 0
          %s265 = scalar_select %p264, %s28, 0
          %s266 = sadd.s32 %s265, %s263
          %s267 = smul.addr %s266, 8
          %s268 = scalar_lea.vmem %s0, %s267
        $region36: #{tpu_custom_call.1} parent=31 // pred_fallthru
          _
        // Predicated region
        $region37: #{tpu_custom_call.1} parent=31 // pred_check
          %p269 = pneg %p82
        $region38: #{tpu_custom_call.1} parent=31 // pred_check_branch
          %271 = sbr.rel (%p269) target = $region40
        $region39: #{tpu_custom_call.1} parent=31 // pred_region
          %p272 = scmp.lt.s32.totalorder %s27, 1
          %s273 = scalar_select %p272, %s27, 1
          %p274 = scmp.lt.s32.totalorder %s28, 0
          %s275 = scalar_select %p274, %s28, 0
          %s276 = sadd.s32 %s275, %s273
          %s277 = smul.addr %s276, 8
          %s278 = scalar_lea.vmem %s1, %s277
        $region40: #{tpu_custom_call.1} parent=31 // pred_fallthru
          _
      $region32: #{tpu_custom_call.1} parent=5 // pred_fallthru
        _
      %p279 = scmp.le.s32.totalorder 1, %s20
      %p280 = scmp.lt.s32.totalorder %s20, 3
      %p281 = pnand %p279, %p280
      %p282 = pneg %p281
      // Predicated region
      $region41: #{tpu_custom_call.1} parent=5 // pred_check
        _
      $region42: #{tpu_custom_call.1} parent=5 // pred_check_branch
        %284 = sbr.rel (%p281) target = $region44
      $region43: #{tpu_custom_call.1} parent=5 // pred_region
        %s285 = ssub.s32 %s20, 1
        %p286 = scmp.lt.s32.totalorder %s29, 1
        %s287 = scalar_select %p286, %s29, 1
        %p288 = scmp.lt.s32.totalorder %s30, 0
        %s289 = scalar_select %p288, %s30, 0
        %s290 = sadd.s32 %s289, %s287
        %s291 = smul.addr %s290, 8
        %s292 = scalar_lea.vmem %s0, %s291
        %p293 = pneg %p60
        %p294 = pneg %p57
        %p295 = scmp.lt.s32.totalorder %s29, 1
        %s296 = scalar_select %p295, %s29, 1
        %p297 = scmp.lt.s32.totalorder %s30, 0
        %s298 = scalar_select %p297, %s30, 0
        %s299 = sadd.s32 %s298, %s296
        %s300 = smul.addr %s299, 8
        %s301 = scalar_lea.vmem %s1, %s300
        %p302 = pneg %p88
        %p303 = pneg %p85
        %p304 = pneg %p109
        %p305 = pneg %p106
        %p306 = pneg %p130
        %p307 = pneg %p127
        %p308 = pneg %p151
        %p309 = pneg %p148
        %p310 = pneg %p172
        %p311 = pneg %p169
        %p312 = pneg %p200
        %p313 = pneg %p197
        %s314 = sand.u32 %s187, 1
        %s315 = scalar_lea.sflag [#allocation3], %s314
        %s316 = sand.u32 %s187, 1
        %s317 = smul.addr %s316, 8
        %s318 = scalar_lea.vmem [#allocation2], %s317
        %p319 = pneg %p228
        %p320 = pneg %p225
        %s321 = sand.u32 %s215, 1
        %s322 = scalar_lea.sflag [#allocation5], %s321
        %s323 = sand.u32 %s215, 1
        %s324 = smul.addr %s323, 8
        %s325 = scalar_lea.vmem [#allocation4], %s324
        %p326 = scmp.lt.s32.totalorder %s29, 1
        %s327 = scalar_select %p326, %s29, 1
        %p328 = scmp.lt.s32.totalorder %s30, 0
        %s329 = scalar_select %p328, %s30, 0
        %s330 = sadd.s32 %s329, %s327
        %s331 = smul.addr %s330, 8
        %s332 = scalar_lea.vmem %s0, %s331
        %p333 = scmp.lt.s32.totalorder %s29, 1
        %s334 = scalar_select %p333, %s29, 1
        %p335 = scmp.lt.s32.totalorder %s30, 0
        %s336 = scalar_select %p335, %s30, 0
        %s337 = sadd.s32 %s336, %s334
        %s338 = smul.addr %s337, 8
        %s339 = scalar_lea.vmem %s1, %s338
        %v340 = vld [vmem:[%s332] sm:$0xff]
        %v341 = vld [vmem:[%s339] sm:$0xff]
        %v342 = vld [vmem:[%s2] sm:$0xff]
        %v343 = vld [vmem:[%s2 + $0x8] sm:$0xff]
        %v344 = vld [vmem:[%s2 + $0x10] sm:$0xff]
        %v345 = vld [vmem:[%s2 + $0x18] sm:$0xff]
        %v346 = vld [vmem:[%s3] sm:$0x1]
        %v348 = vlaneseq
        %v349 = vshrl.u32 %v348, 7
        %v350 = vsub.s32 0, %v349
        %v351 = vrot.slane %v346, %v350
        %vm353 = vcmask 261120
        %v355 = vsel %vm353, %v340, 0
        %357 = vmatprep.subr.mxu0 0.0
        %358 = vmatpush1.msra.mxu0 %v342
        %359 = vmatprep.subr.mxu0 0.0
        %360 = vmatpush1.msra.mxu0 %v343
        %361 = vmatprep.subr.mxu0 0.0
        %362 = vmatpush1.msra.mxu0 %v344
        %363 = vmatprep.subr.mxu0 0.0
        %364 = vmatpush1.msra.mxu0 %v345
        %365 = vmatprep.subr.mxu0 0.0
        %366 = vmatpush1.msra.mxu0 0.0
        %367 = vmatprep.subr.mxu0 0.0
        %368 = vmatpush1.msra.mxu0 0.0
        %369 = vmatprep.subr.mxu0 0.0
        %370 = vmatpush1.msra.mxu0 0.0
        %371 = vmatprep.subr.mxu0 0.0
        %372 = vmatpush1.msra.mxu0 0.0
        %373 = vmatprep.subr.mxu0 0.0
        %374 = vmatpush1.msra.mxu0 0.0
        %375 = vmatprep.subr.mxu0 0.0
        %376 = vmatpush1.msra.mxu0 0.0
        %377 = vmatprep.subr.mxu0 0.0
        %378 = vmatpush1.msra.mxu0 0.0
        %379 = vmatprep.subr.mxu0 0.0
        %380 = vmatpush1.msra.mxu0 0.0
        %381 = vmatprep.subr.mxu0 0.0
        %382 = vmatpush1.msra.mxu0 0.0
        %383 = vmatprep.subr.mxu0 0.0
        %384 = vmatpush1.msra.mxu0 0.0
        %385 = vmatprep.subr.mxu0 0.0
        %386 = vmatpush1.msra.mxu0 0.0
        %387 = vmatprep.subr.mxu0 0.0
        %388 = vmatpush1.msra.mxu0 0.0
        %389 = vmatprep.subr.mxu0 0.0
        %390 = vmatpush1.msra.mxu0 0.0
        %391 = vmatprep.subr.mxu0 0.0
        %392 = vmatpush1.msra.mxu0 0.0
        %393 = vmatprep.subr.mxu0 0.0
        %394 = vmatpush1.msra.mxu0 0.0
        %395 = vmatprep.subr.mxu0 0.0
        %396 = vmatpush1.msra.mxu0 0.0
        %397 = vmatprep.subr.mxu0 0.0
        %398 = vmatpush1.msra.mxu0 0.0
        %399 = vmatprep.subr.mxu0 0.0
        %400 = vmatpush1.msra.mxu0 0.0
        %401 = vmatprep.subr.mxu0 0.0
        %402 = vmatpush1.msra.mxu0 0.0
        %403 = vmatprep.subr.mxu0 0.0
        %404 = vmatpush1.msra.mxu0 0.0
        %405 = vmatprep.subr.mxu0 0.0
        %406 = vmatpush1.msra.mxu0 0.0
        %407 = vmatprep.subr.mxu0 0.0
        %408 = vmatpush1.msra.mxu0 0.0
        %409 = vmatprep.subr.mxu0 0.0
        %410 = vmatpush1.msra.mxu0 0.0
        %411 = vmatprep.subr.mxu0 0.0
        %412 = vmatpush1.msra.mxu0 0.0
        %413 = vmatprep.subr.mxu0 0.0
        %414 = vmatpush1.msra.mxu0 0.0
        %415 = vmatprep.subr.mxu0 0.0
        %416 = vmatpush1.msra.mxu0 0.0
        %417 = vmatprep.subr.mxu0 0.0
        %418 = vmatpush1.msra.mxu0 0.0
        %419 = vmatprep.subr.mxu0 0.0
        %420 = vmatpush1.msra.mxu0 0.0
        %421 = vmatprep.mubr.f32.mxu0 0.0
        %422 = vmatmul.mubr.f32.gmra.mrb[0].mxu0 %v355
        %v423 = vpop.f32.mrb[0].mxu0
        %v424 = vadd.f32 %v351, %v423
        %v425 = vpop.f32.mrb[0].mxu0
        %426 = vdwg.mxu0
        %v427 = vld [vmem:[%s4] sm:$0xff]
        %v428 = vld [vmem:[%s4 + $0x8] sm:$0xff]
        %v429 = vld [vmem:[%s4 + $0x10] sm:$0xff]
        %v430 = vld [vmem:[%s4 + $0x18] sm:$0xff]
        %v431 = vld [vmem:[%s5] sm:$0x1]
        %v433 = vlaneseq
        %v434 = vshrl.u32 %v433, 7
        %v435 = vsub.s32 0, %v434
        %v436 = vrot.slane %v431, %v435
        %v439 = vsel %vm353, %v341, 0
        %441 = vmatprep.subr.mxu0 0.0
        %442 = vmatpush1.msra.mxu0 %v427
        %443 = vmatprep.subr.mxu0 0.0
        %444 = vmatpush1.msra.mxu0 %v428
        %445 = vmatprep.subr.mxu0 0.0
        %446 = vmatpush1.msra.mxu0 %v429
        %447 = vmatprep.subr.mxu0 0.0
        %448 = vmatpush1.msra.mxu0 %v430
        %449 = vmatprep.subr.mxu0 0.0
        %450 = vmatpush1.msra.mxu0 0.0
        %451 = vmatprep.subr.mxu0 0.0
        %452 = vmatpush1.msra.mxu0 0.0
        %453 = vmatprep.subr.mxu0 0.0
        %454 = vmatpush1.msra.mxu0 0.0
        %455 = vmatprep.subr.mxu0 0.0
        %456 = vmatpush1.msra.mxu0 0.0
        %457 = vmatprep.subr.mxu0 0.0
        %458 = vmatpush1.msra.mxu0 0.0
        %459 = vmatprep.subr.mxu0 0.0
        %460 = vmatpush1.msra.mxu0 0.0
        %461 = vmatprep.subr.mxu0 0.0
        %462 = vmatpush1.msra.mxu0 0.0
        %463 = vmatprep.subr.mxu0 0.0
        %464 = vmatpush1.msra.mxu0 0.0
        %465 = vmatprep.subr.mxu0 0.0
        %466 = vmatpush1.msra.mxu0 0.0
        %467 = vmatprep.subr.mxu0 0.0
        %468 = vmatpush1.msra.mxu0 0.0
        %469 = vmatprep.subr.mxu0 0.0
        %470 = vmatpush1.msra.mxu0 0.0
        %471 = vmatprep.subr.mxu0 0.0
        %472 = vmatpush1.msra.mxu0 0.0
        %473 = vmatprep.subr.mxu0 0.0
        %474 = vmatpush1.msra.mxu0 0.0
        %475 = vmatprep.subr.mxu0 0.0
        %476 = vmatpush1.msra.mxu0 0.0
        %477 = vmatprep.subr.mxu0 0.0
        %478 = vmatpush1.msra.mxu0 0.0
        %479 = vmatprep.subr.mxu0 0.0
        %480 = vmatpush1.msra.mxu0 0.0
        %481 = vmatprep.subr.mxu0 0.0
        %482 = vmatpush1.msra.mxu0 0.0
        %483 = vmatprep.subr.mxu0 0.0
        %484 = vmatpush1.msra.mxu0 0.0
        %485 = vmatprep.subr.mxu0 0.0
        %486 = vmatpush1.msra.mxu0 0.0
        %487 = vmatprep.subr.mxu0 0.0
        %488 = vmatpush1.msra.mxu0 0.0
        %489 = vmatprep.subr.mxu0 0.0
        %490 = vmatpush1.msra.mxu0 0.0
        %491 = vmatprep.subr.mxu0 0.0
        %492 = vmatpush1.msra.mxu0 0.0
        %493 = vmatprep.subr.mxu0 0.0
        %494 = vmatpush1.msra.mxu0 0.0
        %495 = vmatprep.subr.mxu0 0.0
        %496 = vmatpush1.msra.mxu0 0.0
        %497 = vmatprep.subr.mxu0 0.0
        %498 = vmatpush1.msra.mxu0 0.0
        %499 = vmatprep.subr.mxu0 0.0
        %500 = vmatpush1.msra.mxu0 0.0
        %501 = vmatprep.subr.mxu0 0.0
        %502 = vmatpush1.msra.mxu0 0.0
        %503 = vmatprep.subr.mxu0 0.0
        %504 = vmatpush1.msra.mxu0 0.0
        %505 = vmatprep.mubr.f32.mxu0 0.0
        %506 = vmatmul.mubr.f32.gmra.mrb[0].mxu0 %v439
        %v507 = vpop.f32.mrb[0].mxu0
        %v508 = vadd.f32 %v436, %v507
        %v509 = vpop.f32.mrb[0].mxu0
        %510 = vdwg.mxu0
        %vm511 = vcmask 64512
        %512 = vst.msk [vmem:[%s318] sm:$0xff] %vm511, %v424
        %513 = vst.msk [vmem:[%s325] sm:$0xff] %vm511, %v508
        %s514 = sand.u32 %s187, 1
        %s515 = scalar_lea.sflag [#allocation3], %s514
        %s516 = sand.u32 %s187, 1
        %s517 = smul.addr %s516, 8
        %s518 = scalar_lea.vmem [#allocation2], %s517
        %s519 = sand.u32 %s215, 1
        %s520 = scalar_lea.sflag [#allocation5], %s519
        %s521 = sand.u32 %s215, 1
        %s522 = smul.addr %s521, 8
        %s523 = scalar_lea.vmem [#allocation4], %s522
        // Predicated region
        $region45: #{tpu_custom_call.1} parent=43 // pred_check
          %p524 = pneg %p197
        $region46: #{tpu_custom_call.1} parent=43 // pred_check_branch
          %526 = sbr.rel (%p524) target = $region48
        $region47: #{tpu_custom_call.1} parent=43 // pred_region
          %s528 = ssub.s32 128, 128
          %529 = vsyncadd %s515, %s528
          %s530 = sadd.s32 %s30, %s29
          %s531 = smul.addr %s530, 128
          %s532 = scalar_lea.hbm %s6, %s531
          %s534 = sshll.u32 %s518, 4
          %s535 = int_to_ptr.vmem [resolvable:$true] %s534
          %537 = dma.vmem_to_hbm [thread:$0]  %s535, 128, %s532, %s515
        $region48: #{tpu_custom_call.1} parent=43 // pred_fallthru
          _
        // Predicated region
        $region49: #{tpu_custom_call.1} parent=43 // pred_check
          %p538 = pneg %p225
        $region50: #{tpu_custom_call.1} parent=43 // pred_check_branch
          %540 = sbr.rel (%p538) target = $region52
        $region51: #{tpu_custom_call.1} parent=43 // pred_region
          %s542 = ssub.s32 128, 128
          %543 = vsyncadd %s520, %s542
          %s544 = sadd.s32 %s30, %s29
          %s545 = smul.addr %s544, 128
          %s546 = scalar_lea.hbm %s7, %s545
          %s548 = sshll.u32 %s523, 4
          %s549 = int_to_ptr.vmem [resolvable:$true] %s548
          %551 = dma.vmem_to_hbm [thread:$0]  %s549, 128, %s546, %s520
        $region52: #{tpu_custom_call.1} parent=43 // pred_fallthru
          _
      $region44: #{tpu_custom_call.1} parent=5 // pred_fallthru
        _
      %p552 = scmp.le.s32.totalorder 2, %s20
      // Predicated region
      $region53: #{tpu_custom_call.1} parent=5 // pred_check
        %p553 = pneg %p552
      $region54: #{tpu_custom_call.1} parent=5 // pred_check_branch
        %555 = sbr.rel (%p553) target = $region56
      $region55: #{tpu_custom_call.1} parent=5 // pred_region
        %s556 = ssub.s32 %s20, 2
        // Predicated region
        $region57: #{tpu_custom_call.1} parent=55 // pred_check
          %p557 = pneg %p203
        $region58: #{tpu_custom_call.1} parent=55 // pred_check_branch
          %559 = sbr.rel (%p557) target = $region60
        $region59: #{tpu_custom_call.1} parent=55 // pred_region
          %s560 = sand.u32 %s188, 1
          %s561 = scalar_lea.sflag [#allocation3], %s560
          %s562 = sand.u32 %s188, 1
          %s563 = smul.addr %s562, 8
          %s564 = scalar_lea.vmem [#allocation2], %s563
          %565 = dma.done %s561, 128
        $region60: #{tpu_custom_call.1} parent=55 // pred_fallthru
          _
        // Predicated region
        $region61: #{tpu_custom_call.1} parent=55 // pred_check
          %p566 = pneg %p231
        $region62: #{tpu_custom_call.1} parent=55 // pred_check_branch
          %568 = sbr.rel (%p566) target = $region64
        $region63: #{tpu_custom_call.1} parent=55 // pred_region
          %s569 = sand.u32 %s216, 1
          %s570 = scalar_lea.sflag [#allocation5], %s569
          %s571 = sand.u32 %s216, 1
          %s572 = smul.addr %s571, 8
          %s573 = scalar_lea.vmem [#allocation4], %s572
          %574 = dma.done %s570, 128
        $region64: #{tpu_custom_call.1} parent=55 // pred_fallthru
          _
      $region56: #{tpu_custom_call.1} parent=5 // pred_fallthru
        _
    $region6: #{tpu_custom_call.1} parent=1 // loop_footer
      %s24 = sadd.s32 1, %s20
    $region7: #{tpu_custom_call.1} parent=1 // loop_footer_branch
      %19 = sbr.rel target = $region3
    $region8: #{tpu_custom_call.1} parent=1 // loop_exit
      _
    %575 = vsyncpa [#allocation3], 1
    %s576 = scalar_lea.sflag [#allocation3], 1
    %577 = vsyncpa %s576, 1
    %578 = vsyncpa [#allocation5], 1
    %s579 = scalar_lea.sflag [#allocation5], 1
    %580 = vsyncpa %s579, 1

</llo_original>
